<compile_context>
chip_gen: v5e
topology: v5e:2x2
jax: 0.10.0
libtpu: 0.0.40
codegen_flags: <defaults>
</compile_context>

<pallas_src>
import functools

import jax
import jax.numpy as jnp
from jax.experimental import pallas as pl
from jax.experimental.pallas import tpu as pltpu

BN_EPS = 1e-5  # torch.nn.BatchNorm2d default


# ----------------------------------------------------------------------------
# Fused kernel: global-avg-pool + grouped 1x1 conv (BN folded) + shift + sigmoid
# ----------------------------------------------------------------------------
def _conv_dw_kernel(x_ref, w_ref, shift_ref, o_ref, acc_ref, *, inv_hw, hw, tl, masked):
    t = pl.program_id(2)
    last = pl.num_programs(2) - 1

    @pl.when(t == 0)
    def _init():
        acc_ref[...] = jnp.zeros_like(acc_ref)

    def _accum(tile_f32):
        # Partial spatial sum of this HW tile, per input channel -> (Cb, 1), f32 accumulation.
        acc_ref[...] += jnp.sum(tile_f32, axis=-1, keepdims=True)

    if masked:
        # HW is not a multiple of TL: the final tile reads past the array; mask those lanes.
        @pl.when(t != last)
        def _steady():
            _accum(x_ref[0].astype(jnp.float32))

        @pl.when(t == last)
        def _tail():
            lane = jax.lax.broadcasted_iota(jnp.int32, x_ref.shape[1:], 1)
            valid = (t * tl + lane) < hw
            _accum(jnp.where(valid, x_ref[0].astype(jnp.float32), 0.0))
    else:
        _accum(x_ref[0].astype(jnp.float32))

    @pl.when(t == last)
    def _finalize():
        pooled = acc_ref[...] * inv_hw                      # (Cb, 1): mean over true H*W
        # Grouped 1x1 conv with BN scale folded into w_ref (Cb, r): pure lane-broadcast
        # multiply + add + sigmoid.  No sublane reduction, no MXU.
        z = pooled * w_ref[...] + shift_ref[...]            # (Cb, r)
        o_ref[0] = jax.nn.sigmoid(z).astype(o_ref.dtype)


# ----------------------------------------------------------------------------
# Tiling heuristics
# ----------------------------------------------------------------------------
def _choose_c_block(c, n_batch):
    """Channel-block size: divisor of C that is a multiple of 8 (BlockSpec rule) so the
    channel grid axis can be marked 'parallel' (keeps v7x's 2nd TensorCore busy at small N)."""
    if c % 8 != 0:
        return c  # block dim must equal the full dim when it is not a multiple of 8
    cap = 256 if n_batch >= 2 else max(8, c // 2)  # force >=2 parallel work units if N==1
    cands = [d for d in range(8, c + 1, 8) if c % d == 0 and d <= cap]
    return max(cands) if cands else c


def _choose_hw_tile(hw, cb, itemsize):
    """Whole spatial extent in one block if it fits an 8 MiB budget; else 128-aligned tiles."""
    budget = 8 << 20  # bytes per activation block (pipeline multi-buffers it)
    if hw * cb * itemsize <= budget:
        return hw
    return max(128, (budget // (cb * itemsize)) // 128 * 128)


# ----------------------------------------------------------------------------
def conv_dw_forward(x, params):
    """x: (N, C_in, H, W) NCHW.  Returns (N, oup, 1, 1) like the PyTorch module."""
    w = params["w"]                        # (oup,)  grouped 1x1 conv weight (groups=inp)
    gamma, beta, mean, var = params["bn"]  # BatchNorm2d running-stats params, each (oup,)

    N, C, H, W = x.shape
    oup = w.shape[0]
    assert oup % C == 0, "nn.Conv2d(groups=inp) requires oup % inp == 0"
    r = oup // C
    HW = H * W
    itemsize = x.dtype.itemsize

    # ---- constant folding (outside the kernel; weights are inference constants) ----
    scale = gamma * jax.lax.rsqrt(var + BN_EPS)
    shift = beta - mean * scale
    w2d = (w * scale).reshape(C, r).astype(jnp.float32)      # out o = (c = o//r, j = o%r)
    shift2d = shift.reshape(C, r).astype(jnp.float32)

    # ---- layout: NCHW -> (N, C, H*W), a free view.  No padding, no HBM copies. ----
    x3 = x.reshape(N, C, HW)

    Cb = _choose_c_block(C, N)
    n_cb = C // Cb
    TL = _choose_hw_tile(HW, Cb, itemsize)
    n_hw = (HW + TL - 1) // TL
    masked = (HW % TL) != 0

    # Triple-buffer the activation stream only when there is a real spatial pipeline.
    act_kwargs = {}
    if n_hw >= 3:
        act_kwargs["pipeline_mode"] = pl.Buffered(3)
    nbuf = 3 if n_hw >= 3 else 2

    blk_bytes = Cb * TL * itemsize
    aux_bytes = 2 * (2 * Cb * r * 4) + Cb * 4 + 2 * Cb * r * itemsize  # weights/shift/out bufs + acc
    vmem_limit = int(min(64 << 20, max(16 << 20, nbuf * blk_bytes + aux_bytes + (4 << 20))))

    cost = pl.CostEstimate(
        flops=N * C * HW + 3 * N * oup,
        transcendentals=N * oup,
        bytes_accessed=N * C * HW * itemsize + 2 * C * r * 4 + N * oup * itemsize,
    )

    kernel = functools.partial(_conv_dw_kernel, inv_hw=1.0 / HW, hw=HW, tl=TL, masked=masked)
    out = pl.pallas_call(
        kernel,
        out_shape=jax.ShapeDtypeStruct((N, C, r), x.dtype),
        grid_spec=pltpu.PrefetchScalarGridSpec(
            num_scalar_prefetch=0,
            grid=(N, n_cb, n_hw),
            in_specs=[
                pl.BlockSpec((1, Cb, TL), lambda n, cb, t: (n, cb, t), **act_kwargs),
                pl.BlockSpec((Cb, r), lambda n, cb, t: (cb, 0)),       # folded weight (C, r)
                pl.BlockSpec((Cb, r), lambda n, cb, t: (cb, 0)),       # folded BN shift (C, r)
            ],
            out_specs=pl.BlockSpec((1, Cb, r), lambda n, cb, t: (n, cb, 0)),
            scratch_shapes=[pltpu.VMEM((Cb, 1), jnp.float32)],         # per-channel spatial sum
        ),
        compiler_params=pltpu.CompilerParams(
            dimension_semantics=("parallel", "parallel", "arbitrary"),
            vmem_limit_bytes=vmem_limit,
        ),
        cost_estimate=cost,
    )(x3, w2d, shift2d)

    return out.reshape(N, oup, 1, 1)


# ----------------------------------------------------------------------------
# Pure-JAX reference (same eval-mode semantics) for verification
# ----------------------------------------------------------------------------
def conv_dw_reference(x, params):
    w = params["w"]
    gamma, beta, mean, var = params["bn"]
    N, C, H, W = x.shape
    oup = w.shape[0]
    r = oup // C
    pooled = jnp.mean(x, axis=(2, 3))                         # (N, C)
    conv = pooled[:, jnp.arange(oup) // r] * w[None, :]       # grouped 1x1 conv, no bias
    y = (conv - mean[None, :]) / jnp.sqrt(var[None, :] + BN_EPS) * gamma[None, :] + beta[None, :]
    return jax.nn.sigmoid(y).reshape(N, oup, 1, 1)


# ----------------------------------------------------------------------------
def make_params(key, inp, oup):
    k1, k2, k3, k4, k5 = jax.random.split(key, 5)
    w = jax.random.normal(k1, (oup,), jnp.float32) * 0.5           # Conv2d weight (oup,1,1,1)
    gamma = 1.0 + 0.1 * jax.random.normal(k2, (oup,), jnp.float32)
    beta = 0.1 * jax.random.normal(k3, (oup,), jnp.float32)
    mean = 0.1 * jax.random.normal(k4, (oup,), jnp.float32)
    var = 1.0 + 0.1 * jnp.abs(jax.random.normal(k5, (oup,), jnp.float32))
    return {"w": w, "bn": (gamma, beta, mean, var)}


if __name__ == "__main__":
    # PyTorch-style NCHW input: (batch=2, inp=4, 16, 16); conv_dw(inp=4, oup=8, stride=1)
    key = jax.random.PRNGKey(0)
    kx, kp = jax.random.split(key)
    x = jax.random.normal(kx, (2, 4, 16, 16), jnp.float32)
    params = make_params(kp, inp=4, oup=8)

    fwd = jax.jit(conv_dw_forward)
    out = jax.block_until_ready(fwd(x, params))

    assert out.shape == (2, 8, 1, 1), out.shape
    assert bool(jnp.all(jnp.isfinite(out)))

    ref = conv_dw_reference(x, params)
    assert bool(jnp.allclose(out, ref, rtol=1e-5, atol=1e-5)), (
        "mismatch vs reference: max abs err = %e" % float(jnp.max(jnp.abs(out - ref)))
    )
    print("KERNEL_OK")
</pallas_src>

<mosaic_0001>
module attributes {stable_mosaic.version = 11 : i64} {
  func.func @_conv_dw_kernel(%arg0: i32, %arg1: i32, %arg2: i32, %arg3: memref<1x4x256xf32, #tpu.memory_space<vmem>>, %arg4: memref<4x2xf32, #tpu.memory_space<vmem>>, %arg5: memref<4x2xf32, #tpu.memory_space<vmem>>, %arg6: memref<1x4x2xf32, #tpu.memory_space<vmem>>, %arg7: memref<4x1xf32, #tpu.memory_space<vmem>>) attributes {dimension_semantics = [#tpu.dimension_semantics<parallel>, #tpu.dimension_semantics<parallel>, #tpu.dimension_semantics<arbitrary>], iteration_bounds = array<i64: 2, 1, 1>, scalar_prefetch = 0 : i64, scratch_operands = 1 : i64, tpu.core_type = #tpu.core_type<tc>, window_params = [{transform_indices = @transform_0, window_bounds = array<i64: 1, 4, 256>}, {transform_indices = @transform_1, window_bounds = array<i64: 4, 2>}, {transform_indices = @transform_2, window_bounds = array<i64: 4, 2>}, {transform_indices = @transform_3, window_bounds = array<i64: 1, 4, 2>}]} {
    %c0_i32 = arith.constant 0 : i32
    %0 = arith.cmpi eq, %arg2, %c0_i32 : i32
    %1 = arith.extui %0 : i1 to i32
    %c0_i32_0 = arith.constant 0 : i32
    %2 = arith.cmpi ne, %1, %c0_i32_0 : i32
    scf.if %2 {
      %cst_9 = arith.constant 0.000000e+00 : f32
      %13 = vector.broadcast %cst_9 : f32 to vector<4x1xf32>
      %c0_10 = arith.constant 0 : index
      %c0_11 = arith.constant 0 : index
      %14 = vector.load %arg7[%c0_10, %c0_11] : memref<4x1xf32, #tpu.memory_space<vmem>>, vector<4x1xf32>
      tpu.vector_store %arg7[%c0_10, %c0_11], %13 {strides = array<i32>} : memref<4x1xf32, #tpu.memory_space<vmem>>, vector<4x1xf32>,
    } else {
    }
    %c0 = arith.constant 0 : index
    %c0_1 = arith.constant 0 : index
    %c0_2 = arith.constant 0 : index
    %3 = vector.load %arg3[%c0, %c0_1, %c0_2] : memref<1x4x256xf32, #tpu.memory_space<vmem>>, vector<1x4x256xf32>
    %4 = vector.shape_cast %3 : vector<1x4x256xf32> to vector<4x256xf32>
    %c0_3 = arith.constant 0 : index
    %c0_4 = arith.constant 0 : index
    %5 = vector.load %arg7[%c0_3, %c0_4] : memref<4x1xf32, #tpu.memory_space<vmem>>, vector<4x1xf32>
    %cst = arith.constant dense<0.000000e+00> : vector<4xf32>
    %6 = vector.multi_reduction <add>, %4, %cst [1] : vector<4x256xf32> to vector<4xf32>
    %7 = vector.shape_cast %6 : vector<4xf32> to vector<4x1xf32>
    %8 = arith.addf %5, %7 : vector<4x1xf32>
    %c0_5 = arith.constant 0 : index
    %c0_6 = arith.constant 0 : index
    %9 = vector.load %arg7[%c0_5, %c0_6] : memref<4x1xf32, #tpu.memory_space<vmem>>, vector<4x1xf32>
    tpu.vector_store %arg7[%c0_5, %c0_6], %8 {strides = array<i32>} : memref<4x1xf32, #tpu.memory_space<vmem>>, vector<4x1xf32>,
    %c0_i32_7 = arith.constant 0 : i32
    %10 = arith.cmpi eq, %arg2, %c0_i32_7 : i32
    %11 = arith.extui %10 : i1 to i32
    %c0_i32_8 = arith.constant 0 : i32
    %12 = arith.cmpi ne, %11, %c0_i32_8 : i32
    scf.if %12 {
      %c0_9 = arith.constant 0 : index
      %c0_10 = arith.constant 0 : index
      %13 = vector.load %arg7[%c0_9, %c0_10] : memref<4x1xf32, #tpu.memory_space<vmem>>, vector<4x1xf32>
      %cst_11 = arith.constant 3.906250e-03 : f32
      %14 = vector.broadcast %cst_11 : f32 to vector<4x1xf32>
      %15 = arith.mulf %13, %14 : vector<4x1xf32>
      %c0_12 = arith.constant 0 : index
      %c0_13 = arith.constant 0 : index
      %16 = vector.load %arg4[%c0_12, %c0_13] : memref<4x2xf32, #tpu.memory_space<vmem>>, vector<4x2xf32>
      %17 = vector.broadcast %15 : vector<4x1xf32> to vector<4x2xf32>
      %18 = arith.mulf %17, %16 : vector<4x2xf32>
      %c0_14 = arith.constant 0 : index
      %c0_15 = arith.constant 0 : index
      %19 = vector.load %arg5[%c0_14, %c0_15] : memref<4x2xf32, #tpu.memory_space<vmem>>, vector<4x2xf32>
      %20 = arith.addf %18, %19 : vector<4x2xf32>
      %21 = arith.negf %20 : vector<4x2xf32>
      %22 = math.exp %21 : vector<4x2xf32>
      %cst_16 = arith.constant 1.000000e+00 : f32
      %23 = vector.broadcast %cst_16 : f32 to vector<4x2xf32>
      %24 = arith.addf %23, %22 : vector<4x2xf32>
      %25 = arith.divf %23, %24 : vector<4x2xf32>
      %c0_17 = arith.constant 0 : index
      %c0_18 = arith.constant 0 : index
      %c0_19 = arith.constant 0 : index
      %26 = vector.load %arg6[%c0_17, %c0_18, %c0_19] : memref<1x4x2xf32, #tpu.memory_space<vmem>>, vector<1x4x2xf32>
      %27 = vector.shape_cast %26 : vector<1x4x2xf32> to vector<4x2xf32>
      %28 = vector.shape_cast %25 : vector<4x2xf32> to vector<1x4x2xf32>
      tpu.vector_store %arg6[%c0_17, %c0_18, %c0_19], %28 {strides = array<i32>} : memref<1x4x2xf32, #tpu.memory_space<vmem>>, vector<1x4x2xf32>,
    } else {
    }
    return
  }
  func.func @transform_0(%arg0: i32, %arg1: i32, %arg2: i32) -> (i32, i32, i32) {
    %c0_i32 = arith.constant 0 : i32
    return %arg0, %arg1, %arg2 : i32, i32, i32
  }
  func.func @transform_1(%arg0: i32, %arg1: i32, %arg2: i32) -> (i32, i32) {
    %c0_i32 = arith.constant 0 : i32
    %c0_i32_0 = arith.constant 0 : i32
    return %arg1, %c0_i32 : i32, i32
  }
  func.func @transform_2(%arg0: i32, %arg1: i32, %arg2: i32) -> (i32, i32) {
    %c0_i32 = arith.constant 0 : i32
    %c0_i32_0 = arith.constant 0 : i32
    return %arg1, %c0_i32 : i32, i32
  }
  func.func @transform_3(%arg0: i32, %arg1: i32, %arg2: i32) -> (i32, i32, i32) {
    %c0_i32 = arith.constant 0 : i32
    %c0_i32_0 = arith.constant 0 : i32
    return %arg0, %arg1, %c0_i32 : i32, i32, i32
  }
}

</mosaic_0001>

<llo_original>
// kernel: conv_dw_forward.1
$region0: #{conv_dw_forward.1}
  #allocation0 [shape = 'u32[]', space=smem, size = 0x4, offset = 0x4, fixed_abs, tag = 'smem constant byte address 0x4 - core index']
  #allocation1 [shape = 'u32[72,128]{1,0:T(1,128)}', space=vmem, size = 0x9000, scoped, tag = 'internal scratch']
  #allocation2 [shape = 'f32[4,1]{1,0:T(4,128)}', space=vmem, size = 0x800, scoped, tag = 'scratch operand']
  %s0 = inlined_call_operand.vmem [shape: f32[2,4,256], index: 0, kind: input, shape index: {}]
  %s1 = inlined_call_operand.vmem [shape: f32[4,2], index: 1, kind: input, shape index: {}]
  %s2 = inlined_call_operand.vmem [shape: f32[4,2], index: 2, kind: input, shape index: {}]
  %s3 = inlined_call_operand.vmem [shape: f32[2,4,2], index: 3, kind: output, shape index: {}]
  %s4 = sld [smem:[#allocation0]]
  $region53: #{conv_dw_forward.1} parent=0
    _
  %s6 = ssub.s32 1, %s4
  %s7 = scalar_select 0, %s6, %s4
  loop: start=0, step=1, limit=4
  $region2: #{conv_dw_forward.1} parent=0 // loop_pre_header
    _
  $region3: #{conv_dw_forward.1} parent=0 // loop_header
    %s9 = sphi 0, %s13
    %p10 = scmp.ge.s32.totalorder %s9, 4
    %s16 = sphi 0, %s35
    %s17 = sphi 0, %s31
    %s18 = sphi 0, %s27
    %s19 = sphi 0, %s16
    %s20 = sphi 0, %s17
    %s21 = sphi 0, %s18
    %s22 = sphi 0, %s19
    %s23 = sphi 0, %s20
    %s24 = sphi 0, %s21
    %s42 = sphi 0, %s44
    %s45 = sphi 0, %s42
    %s46 = sphi 0, %s45
    %s62 = sphi 0, %s46
    %s68 = sphi 0, %s70
    %s71 = sphi 0, %s68
    %s72 = sphi 0, %s71
    %s88 = sphi 0, %s72
    %s94 = sphi 0, %s96
    %s97 = sphi 0, %s94
    %s98 = sphi 0, %s97
    %s114 = sphi 0, %s98
    %s122 = sphi 0, %s124
    %s125 = sphi 0, %s122
    %s126 = sphi 0, %s125
    %s142 = sphi 0, %s126
  $region4: #{conv_dw_forward.1} parent=0 // loop_header_branch
    %12 = sbr.rel (%p10) target = $region8
  $region5: #{conv_dw_forward.1} parent=0 // loop_body
    %s14 = ssub.s32 %s9, 1
    %s15 = ssub.s32 %s9, 2
    %s25 = sadd.s32 1, %s18
    %p26 = scmp.ge.s32.totalorder %s25, 1
    %s27 = scalar_select %p26, 0, %s25
    %s28 = sadd.s32 1, %s17
    %s29 = scalar_select %p26, %s28, %s17
    %p30 = scmp.ge.s32.totalorder %s29, 1
    %s31 = scalar_select %p30, 0, %s29
    %s32 = sadd.s32 1, %s16
    %s33 = scalar_select %p30, %s32, %s16
    %p34 = scmp.ge.s32.totalorder %s33, 2
    %s35 = scalar_select %p34, 0, %s33
    %s36 = ssub.s32 %s16, %s35
    %s37 = ssub.s32 %s17, %s31
    %s38 = sor.u32 %s36, %s37
    %s39 = ssub.s32 %s18, %s27
    %s40 = sor.u32 %s38, %s39
    %p41 = scmp.eq.s32.totalorder %s40, 0
    %s43 = sadd.s32 %s42, 1
    %s44 = scalar_select %p41, %s42, %s43
    %p47 = pneg %p41
    %p48 = scmp.eq.s32.totalorder %s9, 1
    %p49 = por %p47, %p48
    %p50 = scmp.ne.s32.totalorder %s42, %s45
    %p51 = scmp.eq.s32.totalorder %s9, 0
    %p52 = por %p50, %p51
    %p53 = scmp.ne.s32.totalorder %s42, %s45
    %p54 = scmp.eq.s32.totalorder %s14, 1
    %p55 = por %p53, %p54
    %p56 = scmp.ne.s32.totalorder %s45, %s46
    %p57 = scmp.eq.s32.totalorder %s14, 0
    %p58 = por %p56, %p57
    %p59 = scmp.ne.s32.totalorder %s45, %s46
    %p60 = scmp.eq.s32.totalorder %s15, 1
    %p61 = por %p59, %p60
    %p63 = scmp.ne.s32.totalorder %s46, %s62
    %p64 = scmp.eq.s32.totalorder %s15, 0
    %p65 = por %p63, %p64
    %s66 = ssub.s32 %s17, %s31
    %p67 = scmp.eq.s32.totalorder %s66, 0
    %s69 = sadd.s32 %s68, 1
    %s70 = scalar_select %p67, %s68, %s69
    %p73 = pneg %p67
    %p74 = scmp.eq.s32.totalorder %s9, 1
    %p75 = por %p73, %p74
    %p76 = scmp.ne.s32.totalorder %s68, %s71
    %p77 = scmp.eq.s32.totalorder %s9, 0
    %p78 = por %p76, %p77
    %p79 = scmp.ne.s32.totalorder %s68, %s71
    %p80 = scmp.eq.s32.totalorder %s14, 1
    %p81 = por %p79, %p80
    %p82 = scmp.ne.s32.totalorder %s71, %s72
    %p83 = scmp.eq.s32.totalorder %s14, 0
    %p84 = por %p82, %p83
    %p85 = scmp.ne.s32.totalorder %s71, %s72
    %p86 = scmp.eq.s32.totalorder %s15, 1
    %p87 = por %p85, %p86
    %p89 = scmp.ne.s32.totalorder %s72, %s88
    %p90 = scmp.eq.s32.totalorder %s15, 0
    %p91 = por %p89, %p90
    %s92 = ssub.s32 %s17, %s31
    %p93 = scmp.eq.s32.totalorder %s92, 0
    %s95 = sadd.s32 %s94, 1
    %s96 = scalar_select %p93, %s94, %s95
    %p99 = pneg %p93
    %p100 = scmp.eq.s32.totalorder %s9, 1
    %p101 = por %p99, %p100
    %p102 = scmp.ne.s32.totalorder %s94, %s97
    %p103 = scmp.eq.s32.totalorder %s9, 0
    %p104 = por %p102, %p103
    %p105 = scmp.ne.s32.totalorder %s94, %s97
    %p106 = scmp.eq.s32.totalorder %s14, 1
    %p107 = por %p105, %p106
    %p108 = scmp.ne.s32.totalorder %s97, %s98
    %p109 = scmp.eq.s32.totalorder %s14, 0
    %p110 = por %p108, %p109
    %p111 = scmp.ne.s32.totalorder %s97, %s98
    %p112 = scmp.eq.s32.totalorder %s15, 1
    %p113 = por %p111, %p112
    %p115 = scmp.ne.s32.totalorder %s98, %s114
    %p116 = scmp.eq.s32.totalorder %s15, 0
    %p117 = por %p115, %p116
    %s118 = ssub.s32 %s16, %s35
    %s119 = ssub.s32 %s17, %s31
    %s120 = sor.u32 %s118, %s119
    %p121 = scmp.eq.s32.totalorder %s120, 0
    %s123 = sadd.s32 %s122, 1
    %s124 = scalar_select %p121, %s122, %s123
    %p127 = pneg %p121
    %p128 = scmp.eq.s32.totalorder %s9, 1
    %p129 = por %p127, %p128
    %p130 = scmp.ne.s32.totalorder %s122, %s125
    %p131 = scmp.eq.s32.totalorder %s9, 0
    %p132 = por %p130, %p131
    %p133 = scmp.ne.s32.totalorder %s122, %s125
    %p134 = scmp.eq.s32.totalorder %s14, 1
    %p135 = por %p133, %p134
    %p136 = scmp.ne.s32.totalorder %s125, %s126
    %p137 = scmp.eq.s32.totalorder %s14, 0
    %p138 = por %p136, %p137
    %p139 = scmp.ne.s32.totalorder %s125, %s126
    %p140 = scmp.eq.s32.totalorder %s15, 1
    %p141 = por %p139, %p140
    %p143 = scmp.ne.s32.totalorder %s126, %s142
    %p144 = scmp.eq.s32.totalorder %s15, 0
    %p145 = por %p143, %p144
    %p146 = scmp.le.s32.totalorder 1, %s9
    %p147 = scmp.lt.s32.totalorder %s9, 3
    %p148 = pnand %p146, %p147
    %p149 = pneg %p148
    // Predicated region
    $region9: #{conv_dw_forward.1} parent=5 // pred_check
      _
    $region10: #{conv_dw_forward.1} parent=5 // pred_check_branch
      %151 = sbr.rel (%p148) target = $region12
    $region11: #{conv_dw_forward.1} parent=5 // pred_region
      %s152 = ssub.s32 %s9, 1
      // Predicated region
      $region13: #{conv_dw_forward.1} parent=11 // pred_check
        %p153 = pneg %p84
      $region14: #{conv_dw_forward.1} parent=11 // pred_check_branch
        %155 = sbr.rel (%p153) target = $region16
      $region15: #{conv_dw_forward.1} parent=11 // pred_region
        %p156 = scmp.lt.s32.totalorder %s20, 0
        %s157 = scalar_select %p156, %s20, 0
        %s158 = smul.addr %s157, 4
        %s159 = scalar_lea.vmem %s1, %s158
      $region16: #{conv_dw_forward.1} parent=11 // pred_fallthru
        _
      // Predicated region
      $region17: #{conv_dw_forward.1} parent=11 // pred_check
        %p160 = pneg %p110
      $region18: #{conv_dw_forward.1} parent=11 // pred_check_branch
        %162 = sbr.rel (%p160) target = $region20
      $region19: #{conv_dw_forward.1} parent=11 // pred_region
        %p163 = scmp.lt.s32.totalorder %s20, 0
        %s164 = scalar_select %p163, %s20, 0
        %s165 = smul.addr %s164, 4
        %s166 = scalar_lea.vmem %s2, %s165
      $region20: #{conv_dw_forward.1} parent=11 // pred_fallthru
        _
    $region12: #{conv_dw_forward.1} parent=5 // pred_fallthru
      _
    %p167 = scmp.lt.s32.totalorder %s9, 2
    // Predicated region
    $region21: #{conv_dw_forward.1} parent=5 // pred_check
      %p168 = pneg %p167
    $region22: #{conv_dw_forward.1} parent=5 // pred_check_branch
      %170 = sbr.rel (%p168) target = $region24
    $region23: #{conv_dw_forward.1} parent=5 // pred_region
      // Predicated region
      $region25: #{conv_dw_forward.1} parent=23 // pred_check
        %p171 = pneg %p52
      $region26: #{conv_dw_forward.1} parent=23 // pred_check_branch
        %173 = sbr.rel (%p171) target = $region28
      $region27: #{conv_dw_forward.1} parent=23 // pred_region
        %s174 = smul.u32 2, %s18
        %p175 = scmp.lt.s32.totalorder %s16, 1
        %s176 = scalar_select %p175, %s16, 1
        %p177 = scmp.lt.s32.totalorder %s17, 0
        %s178 = scalar_select %p177, %s17, 0
        %p179 = scmp.lt.s32.totalorder %s174, 1
        %s180 = scalar_select %p179, %s174, 1
        %s181 = smul.addr %s178, 2
        %s182 = sadd.s32 %s180, %s181
        %s183 = smul.addr %s176, 2
        %s184 = sadd.s32 %s182, %s183
        %s185 = smul.addr %s184, 4
        %s186 = scalar_lea.vmem %s0, %s185
        %s187 = smul.u32 2, %s18
      $region28: #{conv_dw_forward.1} parent=23 // pred_fallthru
        _
    $region24: #{conv_dw_forward.1} parent=5 // pred_fallthru
      _
    %p188 = scmp.le.s32.totalorder 1, %s9
    %p189 = scmp.lt.s32.totalorder %s9, 3
    %p190 = pnand %p188, %p189
    %p191 = pneg %p190
    // Predicated region
    $region29: #{conv_dw_forward.1} parent=5 // pred_check
      _
    $region30: #{conv_dw_forward.1} parent=5 // pred_check_branch
      %193 = sbr.rel (%p190) target = $region32
    $region31: #{conv_dw_forward.1} parent=5 // pred_region
      %s194 = ssub.s32 %s9, 1
      %s195 = smul.u32 2, %s21
      %p196 = scmp.lt.s32.totalorder %s19, 1
      %s197 = scalar_select %p196, %s19, 1
      %p198 = scmp.lt.s32.totalorder %s20, 0
      %s199 = scalar_select %p198, %s20, 0
      %p200 = scmp.lt.s32.totalorder %s195, 1
      %s201 = scalar_select %p200, %s195, 1
      %s202 = smul.addr %s199, 2
      %s203 = sadd.s32 %s201, %s202
      %s204 = smul.addr %s197, 2
      %s205 = sadd.s32 %s203, %s204
      %s206 = smul.addr %s205, 4
      %s207 = scalar_lea.vmem %s0, %s206
      %p208 = pneg %p58
      %p209 = pneg %p55
      %p210 = scmp.lt.s32.totalorder %s20, 0
      %s211 = scalar_select %p210, %s20, 0
      %s212 = smul.addr %s211, 4
      %s213 = scalar_lea.vmem %s1, %s212
      %p214 = pneg %p84
      %p215 = pneg %p81
      %p216 = scmp.lt.s32.totalorder %s20, 0
      %s217 = scalar_select %p216, %s20, 0
      %s218 = smul.addr %s217, 4
      %s219 = scalar_lea.vmem %s2, %s218
      %p220 = pneg %p110
      %p221 = pneg %p107
      %p222 = pneg %p138
      %p223 = pneg %p135
      %p224 = scmp.lt.s32.totalorder %s19, 1
      %s225 = scalar_select %p224, %s19, 1
      %p226 = scmp.lt.s32.totalorder %s20, 0
      %s227 = scalar_select %p226, %s20, 0
      %s228 = sadd.s32 %s227, %s225
      %s229 = smul.addr %s228, 4
      %s230 = scalar_lea.vmem %s3, %s229
      %s231 = smul.u32 2, %s21
      %p232 = scmp.lt.s32.totalorder %s19, 1
      %s233 = scalar_select %p232, %s19, 1
      %p234 = scmp.lt.s32.totalorder %s20, 0
      %s235 = scalar_select %p234, %s20, 0
      %p236 = scmp.lt.s32.totalorder %s231, 1
      %s237 = scalar_select %p236, %s231, 1
      %s238 = smul.addr %s235, 2
      %s239 = sadd.s32 %s237, %s238
      %s240 = smul.addr %s233, 2
      %s241 = sadd.s32 %s239, %s240
      %s242 = smul.addr %s241, 4
      %s243 = scalar_lea.vmem %s0, %s242
      %s244 = smul.u32 2, %s21
      %p245 = scmp.lt.s32.totalorder %s20, 0
      %s246 = scalar_select %p245, %s20, 0
      %s247 = smul.addr %s246, 4
      %s248 = scalar_lea.vmem %s1, %s247
      %p249 = scmp.lt.s32.totalorder %s20, 0
      %s250 = scalar_select %p249, %s20, 0
      %s251 = smul.addr %s250, 4
      %s252 = scalar_lea.vmem %s2, %s251
      %p253 = scmp.lt.s32.totalorder %s19, 1
      %s254 = scalar_select %p253, %s19, 1
      %p255 = scmp.lt.s32.totalorder %s20, 0
      %s256 = scalar_select %p255, %s20, 0
      %s257 = sadd.s32 %s256, %s254
      %s258 = smul.addr %s257, 4
      %s259 = scalar_lea.vmem %s3, %s258
      %p260 = scmp.eq.s32.totalorder %s21, 0
      // Predicated region
      $region33: #{conv_dw_forward.1} parent=31 // pred_check
        %p261 = pneg %p260
      $region34: #{conv_dw_forward.1} parent=31 // pred_check_branch
        %263 = sbr.rel (%p261) target = $region36
      $region35: #{conv_dw_forward.1} parent=31 // pred_region
        %vm264 = vcmask 3072
        %265 = vst.msk [vmem:[#allocation2] sm:$0xf] %vm264, 0.0
      $region36: #{conv_dw_forward.1} parent=31 // pred_fallthru
        _
      %v266 = vld [vmem:[%s243] sm:$0xff]
      %v267 = vld [vmem:[#allocation2] sm:$0xf]
      %269 = vst [vmem:[#allocation1] ss:$2 sm:$0xff] %v266
      %v270 = vld.sshfl [vmem:[#allocation1] sm:$0xff pattern:$0x75316420]
      %v271 = vld.sshfl [vmem:[#allocation1 + $0x8] sm:$0xff pattern:$0x75316420]
      %vm274 = vcmask 1043456
      %v275 = vsel %vm274, %v270, 0.0
      %v276 = vsel %vm274, %v271, 0.0
      %v277 = vadd.f32 %v275, %v276
      %278 = vadd.xlane.f32.xlu0 %v277
      %v279 = vpop.xlane.xlu0 %278
      %v280 = vadd.f32 %v267, %v279
      %vm281 = vcmask 3072
      %282 = vst.msk [vmem:[#allocation2] sm:$0xf] %vm281, %v280
      // Predicated region
      $region37: #{conv_dw_forward.1} parent=31 // pred_check
        %p283 = pneg %p260
      $region38: #{conv_dw_forward.1} parent=31 // pred_check_branch
        %285 = sbr.rel (%p283) target = $region40
      $region39: #{conv_dw_forward.1} parent=31 // pred_region
        %v286 = vld [vmem:[#allocation2] sm:$0xf]
        %v287 = vmul.f32 %v286, 0.00390625
        %v288 = vld [vmem:[%s248] sm:$0xf]
        %290 = vset.pattern.permute.xlu0 0
        %291 = vperm.xlu0 %290, %v287
        %v292 = vpop.permute.xlu0 %291
        %v294 = vmul.f32 %v292, %v288
        %v295 = vld [vmem:[%s252] sm:$0xf]
        %v296 = vadd.f32 %v294, %v295
        %v297 = vxor.u32 %v296, 2147483648
        %v298 = vmul.f32 %v297, 1.442695
        %v299 = vpow.pop %v298
        %v300 = vadd.f32 %v299, 1.0
        %v301 = vrcp.pop %v300
        %v302 = vmul.f32 %v300, %v301
        %v303 = vsub.f32 1.0, %v302
        %v304 = vmul.f32 %v301, %v303
        %v305 = vadd.f32 %v301, %v304
        %vm306 = vweird.f32 %v300
        %vm307 = vweird.f32 %v301
        %vm308 = vmor %vm306, %vm307
        %v309 = vsel %vm308, %v301, %v305
        %v310 = vand.u32 2147483647, %v300
        %vm311 = vcmp.eq.f32.partialorder %v310, 8.507059e+37
        %v312 = vand.u32 %v300, 2147483648
        %v313 = vor.u32 1.1754944e-38, %v312
        %v314 = vsel %vm311, %v313, %v309
        %v315 = vmul.f32 1.0, %v314
        %vm316 = vcmask 11264
        %317 = vst.msk [vmem:[%s259] sm:$0xf] %vm316, %v315
      $region40: #{conv_dw_forward.1} parent=31 // pred_fallthru
        _
      %p318 = scmp.lt.s32.totalorder %s19, 1
      %s319 = scalar_select %p318, %s19, 1
      %p320 = scmp.lt.s32.totalorder %s20, 0
      %s321 = scalar_select %p320, %s20, 0
      %s322 = sadd.s32 %s321, %s319
      %s323 = smul.addr %s322, 4
      %s324 = scalar_lea.vmem %s3, %s323
      // Predicated region
      $region41: #{conv_dw_forward.1} parent=31 // pred_check
        %p325 = pneg %p135
      $region42: #{conv_dw_forward.1} parent=31 // pred_check_branch
        %327 = sbr.rel (%p325) target = $region44
      $region43: #{conv_dw_forward.1} parent=31 // pred_region
        _
      $region44: #{conv_dw_forward.1} parent=31 // pred_fallthru
        _
    $region32: #{conv_dw_forward.1} parent=5 // pred_fallthru
      _
    %p328 = scmp.le.s32.totalorder 2, %s9
    // Predicated region
    $region45: #{conv_dw_forward.1} parent=5 // pred_check
      %p329 = pneg %p328
    $region46: #{conv_dw_forward.1} parent=5 // pred_check_branch
      %331 = sbr.rel (%p329) target = $region48
    $region47: #{conv_dw_forward.1} parent=5 // pred_region
      %s332 = ssub.s32 %s9, 2
      // Predicated region
      $region49: #{conv_dw_forward.1} parent=47 // pred_check
        %p333 = pneg %p141
      $region50: #{conv_dw_forward.1} parent=47 // pred_check_branch
        %335 = sbr.rel (%p333) target = $region52
      $region51: #{conv_dw_forward.1} parent=47 // pred_region
        %p336 = scmp.lt.s32.totalorder %s22, 1
        %s337 = scalar_select %p336, %s22, 1
        %p338 = scmp.lt.s32.totalorder %s23, 0
        %s339 = scalar_select %p338, %s23, 0
        %s340 = sadd.s32 %s339, %s337
        %s341 = smul.addr %s340, 4
        %s342 = scalar_lea.vmem %s3, %s341
      $region52: #{conv_dw_forward.1} parent=47 // pred_fallthru
        _
    $region48: #{conv_dw_forward.1} parent=5 // pred_fallthru
      _
  $region6: #{conv_dw_forward.1} parent=0 // loop_footer
    %s13 = sadd.s32 1, %s9
  $region7: #{conv_dw_forward.1} parent=0 // loop_footer_branch
    %8 = sbr.rel target = $region3
  $region8: #{conv_dw_forward.1} parent=0 // loop_exit
    _

</llo_original>
